<compile_context>
chip_gen: v5e
topology: v5e:2x2
jax: 0.10.0
libtpu: 0.0.40
codegen_flags: <defaults>
</compile_context>

<pallas_src>
import jax
import jax.numpy as jnp
from jax.experimental import pallas as pl
from jax.experimental.pallas import tpu as pltpu

T = 10      # fixed by the module: x.reshape(B*10, 1) / reshape(B, 10)
LANE = 128


def _forward_kernel(s_ref, x_ref, o_ref):
    """x_ref: (T, TB) tile, batch on lanes. s_ref: (1,1) scalar in SMEM.

    o[0, b] = sum_t relu(x[t, b] * s)   (== full forward after the sum(A) fold)
    """
    s = s_ref[0, 0]                                   # scalar read from SMEM
    feats = jnp.maximum(x_ref[...] * s, 0.0)          # (T, TB)  VPU elementwise
    o_ref[...] = jnp.sum(feats, axis=0, keepdims=True)  # (1, TB) lane-dense store


def module_a_forward(x, w, A_param, *, tb=2048):
    """x: (B, 10) f32, w: (1, 1) f32, A_param: (25, 1) f32 -> (B,) f32."""
    B, Tdim = x.shape
    assert Tdim == T, "module A requires x.shape[1] == 10"
    assert w.shape == (1, 1)

    # Fold the hidden dimension: valid because every A[j] = exp(...) > 0,
    # so relu commutes with the strictly positive scale sum(A).
    s = (w[0, 0] * jnp.sum(A_param)).reshape(1, 1).astype(jnp.float32)

    # Batch on lanes: transpose to (T, B) and pad B up to a multiple of the
    # lane-aligned tile size.
    tb = max(LANE, (int(tb) // LANE) * LANE)
    b_lane = pl.cdiv(B, LANE) * LANE
    tb = min(tb, b_lane)                     # don't over-tile tiny batches
    Bp = pl.cdiv(B, tb) * tb

    xT = jnp.transpose(x)                    # (T, B)
    if Bp != B:
        xT = jnp.pad(xT, ((0, 0), (0, Bp - B)))  # zero pad -> contributes 0

    out = pl.pallas_call(
        _forward_kernel,
        out_shape=jax.ShapeDtypeStruct((1, Bp), jnp.float32),
        grid=(Bp // tb,),
        in_specs=[
            # scalar s: untiled, lives in SMEM for the whole kernel
            pl.BlockSpec(memory_space=pltpu.MemorySpace.SMEM),
            # x tile: (10, TB), batch (lanes) tiled across the grid
            pl.BlockSpec((T, tb), lambda i: (0, i)),
        ],
        out_specs=pl.BlockSpec((1, tb), lambda i: (0, i)),
        compiler_params=pltpu.CompilerParams(
            dimension_semantics=("parallel",),
        ),
    )(s, xT)
    return out[0, :B]


def make_parameter_A():
    # torch.manual_seed(696); a = randn(25, 1)
    # softmax over a size-1 axis is identically 1.0, so exp(softmax(.)) == e
    # regardless of the seed; we mirror the computation structurally.
    a = jax.random.normal(jax.random.PRNGKey(696), (25, 1), dtype=jnp.float32)
    A_init = jnp.exp(jax.nn.softmax(a, axis=1))       # __init__: exp(softmax(a, 1))
    A_fwd = jnp.exp(jax.nn.softmax(A_init, axis=1))   # forward : exp(softmax(A, 1))
    return A_fwd                                       # (25, 1), all entries == e


def reference_forward(x, w, A_param):
    """Pure-JAX reference mirroring the PyTorch code line by line."""
    B = x.shape[0]
    x_expanded = x.reshape((x.shape[0] * x.shape[1], 1))
    W = jnp.matmul(w, A_param.T)                       # (1, 25)
    features = jax.nn.relu(jnp.matmul(x_expanded, W))  # (B*10, 25)
    features = jnp.sum(features, axis=-1)              # (B*10,)
    features = features.reshape(B, 10)
    features = jnp.sum(features, axis=-1)              # (B,)
    return features


if __name__ == "__main__":
    key = jax.random.PRNGKey(0)
    kx, kw, kx2 = jax.random.split(key, 3)

    A_param = make_parameter_A()                       # (25, 1), strictly positive

    # Small deterministic example (batch=2, T=10 as required by the module).
    B = 2
    x = jax.random.normal(kx, (B, T), dtype=jnp.float32)
    w = jax.random.normal(kw, (1, 1), dtype=jnp.float32)

    out = jax.block_until_ready(module_a_forward(x, w, A_param))
    ref = reference_forward(x, w, A_param)
    assert out.shape == (B,)
    assert jnp.allclose(out, ref, rtol=1e-5, atol=1e-5), (out, ref)

    # Exercise the tiled grid path (multiple batch tiles + lane padding).
    B2 = 300
    x2 = jax.random.normal(kx2, (B2, T), dtype=jnp.float32)
    out2 = jax.block_until_ready(module_a_forward(x2, w, A_param, tb=128))
    ref2 = reference_forward(x2, w, A_param)
    assert out2.shape == (B2,)
    assert jnp.allclose(out2, ref2, rtol=1e-5, atol=1e-5)

    print("KERNEL_OK")
</pallas_src>

<mosaic_0001>
module attributes {stable_mosaic.version = 11 : i64} {
  func.func @_forward_kernel(%arg0: i32, %arg1: memref<1x1xf32, #tpu.memory_space<smem>>, %arg2: memref<10x128xf32, #tpu.memory_space<vmem>>, %arg3: memref<1x128xf32, #tpu.memory_space<vmem>>) attributes {dimension_semantics = [#tpu.dimension_semantics<parallel>], iteration_bounds = array<i64: 1>, scalar_prefetch = 0 : i64, scratch_operands = 0 : i64, tpu.core_type = #tpu.core_type<tc>, window_params = [{transform_indices = @transform_0, window_bounds = array<i64: 1, 1>}, {transform_indices = @transform_1, window_bounds = array<i64: 10, 128>}, {transform_indices = @transform_2, window_bounds = array<i64: 1, 128>}]} {
    %c0 = arith.constant 0 : index
    %c0_0 = arith.constant 0 : index
    %0 = memref.load %arg1[%c0, %c0_0] : memref<1x1xf32, #tpu.memory_space<smem>>
    %c0_1 = arith.constant 0 : index
    %c0_2 = arith.constant 0 : index
    %1 = vector.load %arg2[%c0_1, %c0_2] : memref<10x128xf32, #tpu.memory_space<vmem>>, vector<10x128xf32>
    %2 = vector.broadcast %0 : f32 to vector<10x128xf32>
    %3 = arith.mulf %1, %2 : vector<10x128xf32>
    %cst = arith.constant 0.000000e+00 : f32
    %4 = vector.broadcast %cst : f32 to vector<10x128xf32>
    %5 = arith.maximumf %3, %4 : vector<10x128xf32>
    %cst_3 = arith.constant dense<0.000000e+00> : vector<128xf32>
    %6 = vector.multi_reduction <add>, %5, %cst_3 [0] : vector<10x128xf32> to vector<128xf32>
    %7 = vector.shape_cast %6 : vector<128xf32> to vector<1x128xf32>
    %c0_4 = arith.constant 0 : index
    %c0_5 = arith.constant 0 : index
    %8 = vector.load %arg3[%c0_4, %c0_5] : memref<1x128xf32, #tpu.memory_space<vmem>>, vector<1x128xf32>
    tpu.vector_store %arg3[%c0_4, %c0_5], %7 {strides = array<i32>} : memref<1x128xf32, #tpu.memory_space<vmem>>, vector<1x128xf32>,
    return
  }
  func.func @transform_0(%arg0: i32) -> (i32, i32) {
    %c0_i32 = arith.constant 0 : i32
    %c0_i32_0 = arith.constant 0 : i32
    %c0_i32_1 = arith.constant 0 : i32
    return %c0_i32, %c0_i32_0 : i32, i32
  }
  func.func @transform_1(%arg0: i32) -> (i32, i32) {
    %c0_i32 = arith.constant 0 : i32
    %c0_i32_0 = arith.constant 0 : i32
    return %c0_i32, %arg0 : i32, i32
  }
  func.func @transform_2(%arg0: i32) -> (i32, i32) {
    %c0_i32 = arith.constant 0 : i32
    %c0_i32_0 = arith.constant 0 : i32
    return %c0_i32, %arg0 : i32, i32
  }
}

</mosaic_0001>

<llo_original>
// kernel: tpu_custom_call.1
$region0: #{tpu_custom_call.1}
  #allocation0 [shape = 'u32[]', space=smem, size = 0x4, offset = 0x4, fixed_abs, tag = 'smem constant byte address 0x4 - core index']
  #allocation1 [shape = 'u32[72,128]{1,0:T(1,128)}', space=vmem, size = 0x9000, scoped, tag = 'internal scratch']
  #allocation2 [shape = 'f32[1,1]{1,0:T(1,128)S(6)}', space=smem, size = 0x200, scoped, tag = 'scoped memory for tpu_custom_call.1']
  %s0 = inlined_call_operand.<no memory space> [shape: f32[1,1], index: 0, kind: input, shape index: {}]
  %s1 = inlined_call_operand.hbm [shape: f32[10,128], index: 1, kind: input, shape index: {}]
  %s2 = inlined_call_operand.hbm [shape: f32[1,128], index: 2, kind: output, shape index: {}]
  %s3 = sld [smem:[#allocation0]]
  $region22: #{tpu_custom_call.1} parent=0
    _
  %s5 = ssub.s32 1, %s3
  %s6 = scalar_select 0, %s5, %s3
  %7 = sst [smem:[#allocation2]] %s0
  $region1: #{tpu_custom_call.1} parent=0
    #allocation3 [shape = 'u8[8192]{0}', space=vmem, size = 0x2000, scoped, tag = 'input window, operand 1, single buffered']
    #allocation4 [shape = 's32[1]{0}', space=sflag, size = 0x4, scoped, tag = 'scoped memory for tpu_custom_call.1']
    #allocation5 [shape = 's32[1]{0}', space=sflag, size = 0x4, scoped, tag = 'scoped memory for tpu_custom_call.1']
    #allocation6 [shape = 'u8[512]{0}', space=vmem, size = 0x400, scoped, tag = 'output window, operand 0, single buffered']
    %8 = vsyncpa [#allocation4], 0
    %9 = vsyncpa [#allocation5], 0
    // Predicated region
    $region2: #{tpu_custom_call.1} parent=1 // pred_check
      _
    $region3: #{tpu_custom_call.1} parent=1 // pred_check_branch
      %11 = sbr.rel (0) target = $region5
    $region4: #{tpu_custom_call.1} parent=1 // pred_region
      _
    $region5: #{tpu_custom_call.1} parent=1 // pred_fallthru
      _
    // Predicated region
    $region6: #{tpu_custom_call.1} parent=1 // pred_check
      _
    $region7: #{tpu_custom_call.1} parent=1 // pred_check_branch
      %13 = sbr.rel (0) target = $region9
    $region8: #{tpu_custom_call.1} parent=1 // pred_region
      %15 = vsyncadd [#allocation4], 0
      %s16 = sshll.u32 %s1, 4
      %s17 = int_to_ptr.hbm [resolvable:$true] %s16
      %s18 = sshll.u32 [#allocation3], 4
      %s19 = int_to_ptr.vmem [resolvable:$true] %s18
      %24 = dma.hbm_to_vmem [thread:$0]  %s17, 256, %s19, [#allocation4], 128, 128, 8
    $region9: #{tpu_custom_call.1} parent=1 // pred_fallthru
      _
    // Predicated region
    $region10: #{tpu_custom_call.1} parent=1 // pred_check
      _
    $region11: #{tpu_custom_call.1} parent=1 // pred_check_branch
      %26 = sbr.rel (0) target = $region13
    $region12: #{tpu_custom_call.1} parent=1 // pred_region
      %28 = dma.done [#allocation4], 256
    $region13: #{tpu_custom_call.1} parent=1 // pred_fallthru
      _
    %s29 = sld [smem:[#allocation2]]
    %v30 = vld [vmem:[#allocation3] sm:$0xff]
    %v31 = vld [vmem:[#allocation3 + $0x8] sm:$0x3]
    %v32 = vstv %s29
    %v33 = vmul.f32 %v30, %v32
    %v34 = vmul.f32 %v31, %v32
    %v35 = vmax.f32 %v33, 0.0
    %v36 = vmax.f32 %v34, 0.0
    %vm37 = vcmask 1041408
    %v38 = vsel %vm37, %v36, 0.0
    %v39 = vadd.f32 %v35, %v38
    %v40 = vrot.slane %v39, 4
    %v41 = vadd.f32 %v39, %v40
    %v42 = vrot.slane %v41, 2
    %v43 = vadd.f32 %v41, %v42
    %v44 = vrot.slane %v43, 1
    %v45 = vadd.f32 %v43, %v44
    %46 = vst [vmem:[#allocation6] sm:$0x1] %v45
    // Predicated region
    $region14: #{tpu_custom_call.1} parent=1 // pred_check
      _
    $region15: #{tpu_custom_call.1} parent=1 // pred_check_branch
      %48 = sbr.rel (0) target = $region17
    $region16: #{tpu_custom_call.1} parent=1 // pred_region
      %50 = vsyncadd [#allocation5], 0
      %s52 = sshll.u32 [#allocation6], 4
      %s53 = int_to_ptr.vmem [resolvable:$true] %s52
      %s54 = sshll.u32 %s2, 4
      %s55 = int_to_ptr.hbm [resolvable:$true] %s54
      %57 = dma.vmem_to_hbm [thread:$0]  %s53, 16, %s55, [#allocation5]
    $region17: #{tpu_custom_call.1} parent=1 // pred_fallthru
      _
    // Predicated region
    $region18: #{tpu_custom_call.1} parent=1 // pred_check
      _
    $region19: #{tpu_custom_call.1} parent=1 // pred_check_branch
      %59 = sbr.rel (0) target = $region21
    $region20: #{tpu_custom_call.1} parent=1 // pred_region
      %61 = dma.done [#allocation5], 16
    $region21: #{tpu_custom_call.1} parent=1 // pred_fallthru
      _
    %62 = vsyncpa [#allocation4], 1
    %63 = vsyncpa [#allocation5], 1

</llo_original>
